<compile_context>
chip_gen: v7x
topology: tpu7x:2x2x1
jax: 0.10.0
libtpu: 0.0.40
codegen_flags: <defaults>
</compile_context>

<pallas_src>
import numpy as np

import jax
import jax.numpy as jnp
from jax.experimental import pallas as pl
from jax.experimental.pallas import tpu as pltpu


def textcnn_kernel(x_ref, w_ref, b_ref, mask_ref, fcw_ref, fcb_ref, out_ref):
    # x_ref   : (TB, L_pad, D)    bf16
    # w_ref   : (k_max, D, CP)    bf16   fused per-tap conv weights
    # b_ref   : (1, CP)           f32    fused conv bias
    # mask_ref: (T_all, CP)       f32    1.0 where (time, channel) is valid
    # fcw_ref : (CP, CP2)         bf16
    # fcb_ref : (1, CP2)          f32
    # out_ref : (TB, CP2)         f32
    x = x_ref[...]                                     # (TB, L_pad, D) bf16
    w_all = w_ref[...]                                 # (k_max, D, CP) bf16
    TB = x.shape[0]
    k_max, _, CP = w_all.shape
    T_all = mask_ref.shape[0]

    # Tap-sum convolution: one lane-dense MXU matmul per tap, no im2col buffer.
    acc = jnp.zeros((TB, T_all, CP), jnp.float32)
    for j in range(k_max):                             # static unroll, k_max small
        x_slice = x[:, j:j + T_all, :]                 # (TB, T_all, D)
        acc = acc + jnp.einsum(
            "btd,dc->btc", x_slice, w_all[j],
            preferred_element_type=jnp.float32)

    y = acc + b_ref[...]                               # bias broadcast (1, CP)
    y = y * mask_ref[...]                              # zero out invalid (t, c)
    # relu-then-max == max-over-full-time-then-clamp (pooling is full range).
    pooled = jnp.maximum(jnp.max(y, axis=1), 0.0)      # (TB, CP)

    logits = jnp.dot(
        pooled.astype(fcw_ref.dtype), fcw_ref[...],
        preferred_element_type=jnp.float32) + fcb_ref[...]
    out_ref[...] = logits.astype(out_ref.dtype)        # (TB, CP2)


def textcnn_forward(tokens, emb_w, conv_params, fc_w, fc_b, kernel_sizes):
    """tokens: (B, L) int32. Returns logits (B, class_num) f32."""
    ks = tuple(kernel_sizes)
    k_min, k_max = min(ks), max(ks)
    n_w = len(ks)

    # Embedding lookup (plain-JAX glue).
    x_emb = jnp.take(emb_w, tokens, axis=0).astype(jnp.float32)    # (B, L, D)
    B, L, D = x_emb.shape
    assert L >= k_max, "sequence length must be >= the widest conv kernel"

    Co = conv_params[0][0].shape[0]
    class_num = fc_w.shape[1]
    CP = ((n_w * Co + 127) // 128) * 128               # fused conv channels, lane-dense
    CP2 = ((class_num + 127) // 128) * 128             # padded logit width, lane-dense

    T_all = L - k_min + 1                              # longest valid-conv length
    L_pad = L + (k_max - k_min)                        # so every tap slice is in bounds
    x_pad = jnp.pad(x_emb, ((0, 0), (0, L_pad - L), (0, 0)))

    # Fused per-tap weights / bias / validity mask.
    w_fused = jnp.zeros((k_max, D, CP), jnp.float32)
    b_fused = jnp.zeros((1, CP), jnp.float32)
    mask_np = np.zeros((T_all, CP), np.float32)
    for i, ((w, b), k) in enumerate(zip(conv_params, ks)):
        w_r = w.reshape(Co, k, D)                      # PyTorch (Co,1,k,D) -> (Co,k,D)
        col0 = i * Co
        for j in range(k):
            w_fused = w_fused.at[j, :, col0:col0 + Co].set(jnp.transpose(w_r[:, j, :]))
        b_fused = b_fused.at[0, col0:col0 + Co].set(b)
        mask_np[: L - k + 1, col0:col0 + Co] = 1.0
    mask = jnp.asarray(mask_np)

    fcw_pad = jnp.zeros((CP, CP2), jnp.float32).at[: n_w * Co, :class_num].set(fc_w)
    fcb_pad = jnp.zeros((1, CP2), jnp.float32).at[0, :class_num].set(fc_b)

    # Batch tiling: weights stay resident, activations are pipelined per tile.
    # (TB=128 keeps the double-buffered tile small enough even for v7x's
    #  64 MiB VMEM; v5e/v6e could use a larger tile.)
    if B <= 128:
        TB, B_pad = B, B
    else:
        TB = 128
        B_pad = ((B + TB - 1) // TB) * TB
    if B_pad != B:
        x_pad = jnp.pad(x_pad, ((0, B_pad - B), (0, 0), (0, 0)))

    # bf16 into the MXU, f32 accumulation.
    x_bf = x_pad.astype(jnp.bfloat16)
    w_bf = w_fused.astype(jnp.bfloat16)
    fcw_bf = fcw_pad.astype(jnp.bfloat16)

    grid = (B_pad // TB,)
    out = pl.pallas_call(
        textcnn_kernel,
        out_shape=jax.ShapeDtypeStruct((B_pad, CP2), jnp.float32),
        grid=grid,
        in_specs=[
            pl.BlockSpec((TB, L_pad, D), lambda i: (i, 0, 0)),   # activations: tiled
            pl.BlockSpec((k_max, D, CP), lambda i: (0, 0, 0)),   # weights: resident
            pl.BlockSpec((1, CP), lambda i: (0, 0)),
            pl.BlockSpec((T_all, CP), lambda i: (0, 0)),
            pl.BlockSpec((CP, CP2), lambda i: (0, 0)),
            pl.BlockSpec((1, CP2), lambda i: (0, 0)),
        ],
        out_specs=pl.BlockSpec((TB, CP2), lambda i: (i, 0)),
        compiler_params=pltpu.CompilerParams(
            dimension_semantics=("parallel",),        # batch axis -> both TCs on v7x
            vmem_limit_bytes=32 * 1024 * 1024,
        ),
    )(x_bf, w_bf, b_fused, mask, fcw_bf, fcb_pad)

    return out[:B, :class_num]


def textcnn_reference(tokens, emb_w, conv_params, fc_w, fc_b, kernel_sizes):
    """Pure-JAX f32 reference matching the PyTorch forward."""
    x = jnp.take(emb_w, tokens, axis=0)                # (B, L, D)
    B, L, D = x.shape
    feats = []
    for (w, b), k in zip(conv_params, kernel_sizes):
        Co = w.shape[0]
        w_flat = jnp.transpose(w.reshape(Co, k * D))
        T = L - k + 1
        windows = jnp.stack(
            [x[:, t:t + k, :].reshape(B, k * D) for t in range(T)], axis=1)
        y = jnp.einsum("btf,fc->btc", windows, w_flat) + b[None, None, :]
        y = jnp.maximum(y, 0.0)
        feats.append(jnp.max(y, axis=1))
    feat = jnp.concatenate(feats, axis=-1)
    return feat @ fc_w + fc_b[None, :]


if __name__ == "__main__":
    # Small, deterministic config consistent with the module's __init__.
    vocab_size = 50
    embd_dim = 32
    class_num = 4
    kernel_num = 8            # Co
    kernel_sizes = (3, 4, 5)
    B, L = 2, 8

    key = jax.random.PRNGKey(0)
    keys = jax.random.split(key, 3 + 2 * len(kernel_sizes) + 2)

    emb_w = jax.random.normal(keys[0], (vocab_size, embd_dim), jnp.float32) * 0.1
    tokens = jax.random.randint(keys[1], (B, L), 0, vocab_size, jnp.int32)

    conv_params = []
    for i, k in enumerate(kernel_sizes):
        w = jax.random.normal(
            keys[2 + 2 * i], (kernel_num, 1, k, embd_dim), jnp.float32) * 0.1
        b = jax.random.normal(keys[3 + 2 * i], (kernel_num,), jnp.float32) * 0.1
        conv_params.append((w, b))

    fc_in = kernel_num * len(kernel_sizes)
    fc_w = jax.random.normal(keys[-2], (fc_in, class_num), jnp.float32) * 0.1
    fc_b = jax.random.normal(keys[-1], (class_num,), jnp.float32) * 0.1

    logits = textcnn_forward(tokens, emb_w, conv_params, fc_w, fc_b, kernel_sizes)
    logits = jax.block_until_ready(logits)

    ref = textcnn_reference(tokens, emb_w, conv_params, fc_w, fc_b, kernel_sizes)
    assert logits.shape == (B, class_num)
    # bf16 MXU inputs (f32 accumulation) -> slightly looser tolerance than pure f32.
    assert jnp.allclose(logits, ref, atol=1e-2, rtol=1e-2), (logits, ref)

    print("KERNEL_OK")
</pallas_src>

<mosaic_0001>
module attributes {stable_mosaic.version = 11 : i64} {
  func.func @textcnn_kernel(%arg0: i32, %arg1: memref<2x10x32xbf16, #tpu.memory_space<vmem>>, %arg2: memref<5x32x128xbf16, #tpu.memory_space<vmem>>, %arg3: memref<1x128xf32, #tpu.memory_space<vmem>>, %arg4: memref<6x128xf32, #tpu.memory_space<vmem>>, %arg5: memref<128x128xbf16, #tpu.memory_space<vmem>>, %arg6: memref<1x128xf32, #tpu.memory_space<vmem>>, %arg7: memref<2x128xf32, #tpu.memory_space<vmem>>) attributes {dimension_semantics = [#tpu.dimension_semantics<parallel>], iteration_bounds = array<i64: 1>, scalar_prefetch = 0 : i64, scratch_operands = 0 : i64, tpu.core_type = #tpu.core_type<tc>, window_params = [{transform_indices = @transform_0, window_bounds = array<i64: 2, 10, 32>}, {pipeline_mode = #tpu.pipeline_mode<synchronous>, transform_indices = @transform_1, window_bounds = array<i64: 5, 32, 128>}, {pipeline_mode = #tpu.pipeline_mode<synchronous>, transform_indices = @transform_2, window_bounds = array<i64: 1, 128>}, {pipeline_mode = #tpu.pipeline_mode<synchronous>, transform_indices = @transform_3, window_bounds = array<i64: 6, 128>}, {pipeline_mode = #tpu.pipeline_mode<synchronous>, transform_indices = @transform_4, window_bounds = array<i64: 128, 128>}, {pipeline_mode = #tpu.pipeline_mode<synchronous>, transform_indices = @transform_5, window_bounds = array<i64: 1, 128>}, {transform_indices = @transform_6, window_bounds = array<i64: 2, 128>}]} {
    %c0 = arith.constant 0 : index
    %c0_0 = arith.constant 0 : index
    %c0_1 = arith.constant 0 : index
    %0 = vector.load %arg1[%c0, %c0_0, %c0_1] : memref<2x10x32xbf16, #tpu.memory_space<vmem>>, vector<2x10x32xbf16>
    %c0_2 = arith.constant 0 : index
    %c0_3 = arith.constant 0 : index
    %c0_4 = arith.constant 0 : index
    %1 = vector.load %arg2[%c0_2, %c0_3, %c0_4] : memref<5x32x128xbf16, #tpu.memory_space<vmem>>, vector<5x32x128xbf16>
    %cst = arith.constant 0.000000e+00 : f32
    %2 = vector.broadcast %cst : f32 to vector<2x6x128xf32>
    %3 = vector.extract_strided_slice %0 {offsets = [0, 0, 0], sizes = [2, 6, 32], strides = [1, 1, 1]} : vector<2x10x32xbf16> to vector<2x6x32xbf16>
    %4 = vector.extract_strided_slice %1 {offsets = [0, 0, 0], sizes = [1, 32, 128], strides = [1, 1, 1]} : vector<5x32x128xbf16> to vector<1x32x128xbf16>
    %5 = vector.shape_cast %4 : vector<1x32x128xbf16> to vector<32x128xbf16>
    "tpu.trace_start"() <{level = 10 : i32, message = "btd,dc->btc"}> : () -> ()
    %cst_5 = arith.constant dense<0.000000e+00> : vector<2x6x128xf32>
    %6 = tpu.matmul %3, %5, %cst_5 {dimension_numbers = #tpu.dot_dimension_numbers<[2], [0], [0, 1], [1], [0, 0, 0, 1, 1, 1], [], []>} : vector<2x6x32xbf16>, vector<32x128xbf16>, vector<2x6x128xf32> -> vector<2x6x128xf32>
    "tpu.trace_stop"() : () -> ()
    %7 = arith.addf %2, %6 : vector<2x6x128xf32>
    %8 = vector.extract_strided_slice %0 {offsets = [0, 1, 0], sizes = [2, 6, 32], strides = [1, 1, 1]} : vector<2x10x32xbf16> to vector<2x6x32xbf16>
    %9 = vector.extract_strided_slice %1 {offsets = [1, 0, 0], sizes = [1, 32, 128], strides = [1, 1, 1]} : vector<5x32x128xbf16> to vector<1x32x128xbf16>
    %10 = vector.shape_cast %9 : vector<1x32x128xbf16> to vector<32x128xbf16>
    "tpu.trace_start"() <{level = 10 : i32, message = "btd,dc->btc"}> : () -> ()
    %cst_6 = arith.constant dense<0.000000e+00> : vector<2x6x128xf32>
    %11 = tpu.matmul %8, %10, %cst_6 {dimension_numbers = #tpu.dot_dimension_numbers<[2], [0], [0, 1], [1], [0, 0, 0, 1, 1, 1], [], []>} : vector<2x6x32xbf16>, vector<32x128xbf16>, vector<2x6x128xf32> -> vector<2x6x128xf32>
    "tpu.trace_stop"() : () -> ()
    %12 = arith.addf %7, %11 : vector<2x6x128xf32>
    %13 = vector.extract_strided_slice %0 {offsets = [0, 2, 0], sizes = [2, 6, 32], strides = [1, 1, 1]} : vector<2x10x32xbf16> to vector<2x6x32xbf16>
    %14 = vector.extract_strided_slice %1 {offsets = [2, 0, 0], sizes = [1, 32, 128], strides = [1, 1, 1]} : vector<5x32x128xbf16> to vector<1x32x128xbf16>
    %15 = vector.shape_cast %14 : vector<1x32x128xbf16> to vector<32x128xbf16>
    "tpu.trace_start"() <{level = 10 : i32, message = "btd,dc->btc"}> : () -> ()
    %cst_7 = arith.constant dense<0.000000e+00> : vector<2x6x128xf32>
    %16 = tpu.matmul %13, %15, %cst_7 {dimension_numbers = #tpu.dot_dimension_numbers<[2], [0], [0, 1], [1], [0, 0, 0, 1, 1, 1], [], []>} : vector<2x6x32xbf16>, vector<32x128xbf16>, vector<2x6x128xf32> -> vector<2x6x128xf32>
    "tpu.trace_stop"() : () -> ()
    %17 = arith.addf %12, %16 : vector<2x6x128xf32>
    %18 = vector.extract_strided_slice %0 {offsets = [0, 3, 0], sizes = [2, 6, 32], strides = [1, 1, 1]} : vector<2x10x32xbf16> to vector<2x6x32xbf16>
    %19 = vector.extract_strided_slice %1 {offsets = [3, 0, 0], sizes = [1, 32, 128], strides = [1, 1, 1]} : vector<5x32x128xbf16> to vector<1x32x128xbf16>
    %20 = vector.shape_cast %19 : vector<1x32x128xbf16> to vector<32x128xbf16>
    "tpu.trace_start"() <{level = 10 : i32, message = "btd,dc->btc"}> : () -> ()
    %cst_8 = arith.constant dense<0.000000e+00> : vector<2x6x128xf32>
    %21 = tpu.matmul %18, %20, %cst_8 {dimension_numbers = #tpu.dot_dimension_numbers<[2], [0], [0, 1], [1], [0, 0, 0, 1, 1, 1], [], []>} : vector<2x6x32xbf16>, vector<32x128xbf16>, vector<2x6x128xf32> -> vector<2x6x128xf32>
    "tpu.trace_stop"() : () -> ()
    %22 = arith.addf %17, %21 : vector<2x6x128xf32>
    %23 = vector.extract_strided_slice %0 {offsets = [0, 4, 0], sizes = [2, 6, 32], strides = [1, 1, 1]} : vector<2x10x32xbf16> to vector<2x6x32xbf16>
    %24 = vector.extract_strided_slice %1 {offsets = [4, 0, 0], sizes = [1, 32, 128], strides = [1, 1, 1]} : vector<5x32x128xbf16> to vector<1x32x128xbf16>
    %25 = vector.shape_cast %24 : vector<1x32x128xbf16> to vector<32x128xbf16>
    "tpu.trace_start"() <{level = 10 : i32, message = "btd,dc->btc"}> : () -> ()
    %cst_9 = arith.constant dense<0.000000e+00> : vector<2x6x128xf32>
    %26 = tpu.matmul %23, %25, %cst_9 {dimension_numbers = #tpu.dot_dimension_numbers<[2], [0], [0, 1], [1], [0, 0, 0, 1, 1, 1], [], []>} : vector<2x6x32xbf16>, vector<32x128xbf16>, vector<2x6x128xf32> -> vector<2x6x128xf32>
    "tpu.trace_stop"() : () -> ()
    %27 = arith.addf %22, %26 : vector<2x6x128xf32>
    %c0_10 = arith.constant 0 : index
    %c0_11 = arith.constant 0 : index
    %28 = vector.load %arg3[%c0_10, %c0_11] : memref<1x128xf32, #tpu.memory_space<vmem>>, vector<1x128xf32>
    %29 = vector.shape_cast %28 : vector<1x128xf32> to vector<1x1x128xf32>
    %30 = vector.broadcast %29 : vector<1x1x128xf32> to vector<2x6x128xf32>
    %31 = arith.addf %27, %30 : vector<2x6x128xf32>
    %c0_12 = arith.constant 0 : index
    %c0_13 = arith.constant 0 : index
    %32 = vector.load %arg4[%c0_12, %c0_13] : memref<6x128xf32, #tpu.memory_space<vmem>>, vector<6x128xf32>
    %33 = vector.shape_cast %32 : vector<6x128xf32> to vector<1x6x128xf32>
    %34 = vector.broadcast %33 : vector<1x6x128xf32> to vector<2x6x128xf32>
    %35 = arith.mulf %31, %34 : vector<2x6x128xf32>
    %cst_14 = arith.constant dense<0xFF800000> : vector<2x128xf32>
    %36 = vector.multi_reduction <maximumf>, %35, %cst_14 [1] : vector<2x6x128xf32> to vector<2x128xf32>
    %cst_15 = arith.constant 0.000000e+00 : f32
    %37 = vector.broadcast %cst_15 : f32 to vector<2x128xf32>
    %38 = arith.maximumf %36, %37 : vector<2x128xf32>
    %39 = arith.truncf %38 : vector<2x128xf32> to vector<2x128xbf16>
    %c0_16 = arith.constant 0 : index
    %c0_17 = arith.constant 0 : index
    %40 = vector.load %arg5[%c0_16, %c0_17] : memref<128x128xbf16, #tpu.memory_space<vmem>>, vector<128x128xbf16>
    %cst_18 = arith.constant dense<0.000000e+00> : vector<2x128xf32>
    %41 = tpu.matmul %39, %40, %cst_18 {dimension_numbers = #tpu.dot_dimension_numbers<[1], [0], [0], [1], [0, 0, 1, 1], [], []>} : vector<2x128xbf16>, vector<128x128xbf16>, vector<2x128xf32> -> vector<2x128xf32>
    %c0_19 = arith.constant 0 : index
    %c0_20 = arith.constant 0 : index
    %42 = vector.load %arg6[%c0_19, %c0_20] : memref<1x128xf32, #tpu.memory_space<vmem>>, vector<1x128xf32>
    %43 = vector.broadcast %42 : vector<1x128xf32> to vector<2x128xf32>
    %44 = arith.addf %41, %43 : vector<2x128xf32>
    %c0_21 = arith.constant 0 : index
    %c0_22 = arith.constant 0 : index
    %45 = vector.load %arg7[%c0_21, %c0_22] : memref<2x128xf32, #tpu.memory_space<vmem>>, vector<2x128xf32>
    tpu.vector_store %arg7[%c0_21, %c0_22], %44 {strides = array<i32>} : memref<2x128xf32, #tpu.memory_space<vmem>>, vector<2x128xf32>,
    return
  }
  func.func @transform_0(%arg0: i32) -> (i32, i32, i32) {
    %c0_i32 = arith.constant 0 : i32
    %c0_i32_0 = arith.constant 0 : i32
    %c0_i32_1 = arith.constant 0 : i32
    return %arg0, %c0_i32, %c0_i32_0 : i32, i32, i32
  }
  func.func @transform_1(%arg0: i32) -> (i32, i32, i32) {
    %c0_i32 = arith.constant 0 : i32
    %c0_i32_0 = arith.constant 0 : i32
    %c0_i32_1 = arith.constant 0 : i32
    %c0_i32_2 = arith.constant 0 : i32
    return %c0_i32, %c0_i32_0, %c0_i32_1 : i32, i32, i32
  }
  func.func @transform_2(%arg0: i32) -> (i32, i32) {
    %c0_i32 = arith.constant 0 : i32
    %c0_i32_0 = arith.constant 0 : i32
    %c0_i32_1 = arith.constant 0 : i32
    return %c0_i32, %c0_i32_0 : i32, i32
  }
  func.func @transform_3(%arg0: i32) -> (i32, i32) {
    %c0_i32 = arith.constant 0 : i32
    %c0_i32_0 = arith.constant 0 : i32
    %c0_i32_1 = arith.constant 0 : i32
    return %c0_i32, %c0_i32_0 : i32, i32
  }
  func.func @transform_4(%arg0: i32) -> (i32, i32) {
    %c0_i32 = arith.constant 0 : i32
    %c0_i32_0 = arith.constant 0 : i32
    %c0_i32_1 = arith.constant 0 : i32
    return %c0_i32, %c0_i32_0 : i32, i32
  }
  func.func @transform_5(%arg0: i32) -> (i32, i32) {
    %c0_i32 = arith.constant 0 : i32
    %c0_i32_0 = arith.constant 0 : i32
    %c0_i32_1 = arith.constant 0 : i32
    return %c0_i32, %c0_i32_0 : i32, i32
  }
  func.func @transform_6(%arg0: i32) -> (i32, i32) {
    %c0_i32 = arith.constant 0 : i32
    %c0_i32_0 = arith.constant 0 : i32
    return %arg0, %c0_i32 : i32, i32
  }
}

</mosaic_0001>

<llo_original>
// kernel: tpu_custom_call.1
$region0: #{tpu_custom_call.1}
  #allocation0 [shape = 'u32[]', space=smem, size = 0x4, offset = 0x4, fixed_abs, tag = 'smem constant byte address 0x4 - core index']
  #allocation1 [shape = 'u32[144,128]{1,0:T(1,128)}', space=vmem, size = 0x12000, scoped, tag = 'internal scratch']
  %s0 = inlined_call_operand.vmem [shape: bf16[2,10,32], index: 0, kind: input, shape index: {}]
  %s1 = inlined_call_operand.hbm [shape: bf16[5,32,128], index: 1, kind: input, shape index: {}]
  %s2 = inlined_call_operand.vmem [shape: f32[1,128], index: 2, kind: input, shape index: {}]
  %s3 = inlined_call_operand.vmem [shape: f32[6,128], index: 3, kind: input, shape index: {}]
  %s4 = inlined_call_operand.hbm [shape: bf16[128,128], index: 4, kind: input, shape index: {}]
  %s5 = inlined_call_operand.vmem [shape: f32[1,128], index: 5, kind: input, shape index: {}]
  %s6 = inlined_call_operand.hbm [shape: f32[2,128], index: 6, kind: output, shape index: {}]
  %s7 = sld [smem:[#allocation0]]
  $region42: #{tpu_custom_call.1} parent=0
    _
  %s9 = ssub.s32 1, %s7
  %s10 = scalar_select 0, %s9, %s7
  $region1: #{tpu_custom_call.1} parent=0
    #allocation2 [shape = 'u8[40960]{0}', space=vmem, size = 0xa000, scoped, tag = 'input window, operand 1, single buffered']
    #allocation3 [shape = 's32[1]{0}', space=sflag, size = 0x4, scoped, tag = 'scoped memory for tpu_custom_call.1']
    #allocation4 [shape = 's32[1]{0}', space=sflag, size = 0x4, scoped, tag = 'scoped memory for tpu_custom_call.1']
    #allocation5 [shape = 'u8[32768]{0}', space=vmem, size = 0x8000, scoped, tag = 'input window, operand 4, single buffered']
    #allocation6 [shape = 's32[1]{0}', space=sflag, size = 0x4, scoped, tag = 'scoped memory for tpu_custom_call.1']
    #allocation7 [shape = 'u8[1024]{0}', space=vmem, size = 0x400, scoped, tag = 'output window, operand 0, single buffered']
    %11 = vsyncpa [#allocation3], 0
    %12 = vsyncpa [#allocation6], 0
    %13 = vsyncpa [#allocation4], 0
    // Predicated region
    $region2: #{tpu_custom_call.1} parent=1 // pred_check
      _
    $region3: #{tpu_custom_call.1} parent=1 // pred_check_branch
      %15 = sbr.rel (0) target = $region5
    $region4: #{tpu_custom_call.1} parent=1 // pred_region
      _
    $region5: #{tpu_custom_call.1} parent=1 // pred_fallthru
      _
    // Predicated region
    $region6: #{tpu_custom_call.1} parent=1 // pred_check
      _
    $region7: #{tpu_custom_call.1} parent=1 // pred_check_branch
      %17 = sbr.rel (0) target = $region9
    $region8: #{tpu_custom_call.1} parent=1 // pred_region
      %s19 = ssub.s32 1280, 1280
      %20 = vsyncadd [#allocation3], %s19
      %s21 = sshll.u32 [#allocation2], 4
      %s22 = int_to_ptr.vmem [resolvable:$true] %s21
      %27 = dma.hbm_to_vmem [thread:$0]  %s1, 1280, %s22, [#allocation3], 64, 64, 4
    $region9: #{tpu_custom_call.1} parent=1 // pred_fallthru
      _
    // Predicated region
    $region10: #{tpu_custom_call.1} parent=1 // pred_check
      _
    $region11: #{tpu_custom_call.1} parent=1 // pred_check_branch
      %29 = sbr.rel (0) target = $region13
    $region12: #{tpu_custom_call.1} parent=1 // pred_region
      _
    $region13: #{tpu_custom_call.1} parent=1 // pred_fallthru
      _
    // Predicated region
    $region14: #{tpu_custom_call.1} parent=1 // pred_check
      _
    $region15: #{tpu_custom_call.1} parent=1 // pred_check_branch
      %31 = sbr.rel (0) target = $region17
    $region16: #{tpu_custom_call.1} parent=1 // pred_region
      _
    $region17: #{tpu_custom_call.1} parent=1 // pred_fallthru
      _
    // Predicated region
    $region18: #{tpu_custom_call.1} parent=1 // pred_check
      _
    $region19: #{tpu_custom_call.1} parent=1 // pred_check_branch
      %33 = sbr.rel (0) target = $region21
    $region20: #{tpu_custom_call.1} parent=1 // pred_region
      %s35 = ssub.s32 1024, 1024
      %36 = vsyncadd [#allocation6], %s35
      %s37 = sshll.u32 [#allocation5], 4
      %s38 = int_to_ptr.vmem [resolvable:$true] %s37
      %43 = dma.hbm_to_vmem [thread:$0]  %s4, 1024, %s38, [#allocation6], 64, 64, 4
    $region21: #{tpu_custom_call.1} parent=1 // pred_fallthru
      _
    // Predicated region
    $region22: #{tpu_custom_call.1} parent=1 // pred_check
      _
    $region23: #{tpu_custom_call.1} parent=1 // pred_check_branch
      %45 = sbr.rel (0) target = $region25
    $region24: #{tpu_custom_call.1} parent=1 // pred_region
      _
    $region25: #{tpu_custom_call.1} parent=1 // pred_fallthru
      _
    // Predicated region
    $region26: #{tpu_custom_call.1} parent=1 // pred_check
      _
    $region27: #{tpu_custom_call.1} parent=1 // pred_check_branch
      %47 = sbr.rel (0) target = $region29
    $region28: #{tpu_custom_call.1} parent=1 // pred_region
      %48 = dma.done [#allocation3], 1280
    $region29: #{tpu_custom_call.1} parent=1 // pred_fallthru
      _
    // Predicated region
    $region30: #{tpu_custom_call.1} parent=1 // pred_check
      _
    $region31: #{tpu_custom_call.1} parent=1 // pred_check_branch
      %50 = sbr.rel (0) target = $region33
    $region32: #{tpu_custom_call.1} parent=1 // pred_region
      %51 = dma.done [#allocation6], 1024
    $region33: #{tpu_custom_call.1} parent=1 // pred_fallthru
      _
    %v53 = vld [vmem:[%s0] sm:$0xf]
    %v54 = vld [vmem:[%s0 + $0x4] sm:$0x1]
    %v55 = vld [vmem:[%s0 + $0x8] sm:$0xf]
    %v56 = vld [vmem:[%s0 + $0xc] sm:$0x1]
    %v57 = vld [vmem:[#allocation2] sm:$0xf]
    %v58 = vld [vmem:[#allocation2 + $0x4] sm:$0xf]
    %v59 = vld [vmem:[#allocation2 + $0x8] sm:$0xf]
    %v60 = vld [vmem:[#allocation2 + $0xc] sm:$0xf]
    %v61 = vld [vmem:[#allocation2 + $0x10] sm:$0xf]
    %v62 = vld [vmem:[#allocation2 + $0x14] sm:$0xf]
    %v63 = vld [vmem:[#allocation2 + $0x18] sm:$0xf]
    %v64 = vld [vmem:[#allocation2 + $0x1c] sm:$0xf]
    %v65 = vld [vmem:[#allocation2 + $0x20] sm:$0xf]
    %v66 = vld [vmem:[#allocation2 + $0x24] sm:$0xf]
    %v67 = vld [vmem:[#allocation2 + $0x28] sm:$0xf]
    %v68 = vld [vmem:[#allocation2 + $0x2c] sm:$0xf]
    %v69 = vld [vmem:[#allocation2 + $0x30] sm:$0xf]
    %v70 = vld [vmem:[#allocation2 + $0x34] sm:$0xf]
    %v71 = vld [vmem:[#allocation2 + $0x38] sm:$0xf]
    %v72 = vld [vmem:[#allocation2 + $0x3c] sm:$0xf]
    %v73 = vld [vmem:[#allocation2 + $0x40] sm:$0xf]
    %v74 = vld [vmem:[#allocation2 + $0x44] sm:$0xf]
    %v75 = vld [vmem:[#allocation2 + $0x48] sm:$0xf]
    %v76 = vld [vmem:[#allocation2 + $0x4c] sm:$0xf]
    %v80 = vunpack.c.l.s4 1966171168
    %v81 = vunpack.c.0.s8 %v80
    %v82 = vlaneseq
    %v83 = vshrl.u32 %v82, 7
    %v84 = vsub.s32 %v81, %v83
    %v85 = vrot.slane %v53, %v84
    %v86 = vcombine.high %v85, %v85
    %v88 = vunpack.c.l.s4 1966171168
    %v89 = vunpack.c.0.s8 %v88
    %v90 = vlaneseq
    %v91 = vshrl.u32 %v90, 7
    %v92 = vsub.s32 %v89, %v91
    %v93 = vrot.slane %v85, %v92
    %v95 = vunpack.c.l.s4 1966171168
    %v96 = vunpack.c.0.s8 %v95
    %v97 = vlaneseq
    %v98 = vshrl.u32 %v97, 7
    %v99 = vsub.s32 %v96, %v98
    %v100 = vrot.slane %v86, %v99
    %v101 = vcombine.high %v93, %v93
    %v102 = vcombine.high %v100, %v100
    %v104 = vunpack.c.l.s4 1966171168
    %v105 = vunpack.c.0.s8 %v104
    %v106 = vlaneseq
    %v107 = vshrl.u32 %v106, 7
    %v108 = vsub.s32 %v105, %v107
    %v109 = vrot.slane %v55, %v108
    %v110 = vcombine.high %v109, %v109
    %v112 = vunpack.c.l.s4 1966171168
    %v113 = vunpack.c.0.s8 %v112
    %v114 = vlaneseq
    %v115 = vshrl.u32 %v114, 7
    %v116 = vsub.s32 %v113, %v115
    %v117 = vrot.slane %v109, %v116
    %v119 = vunpack.c.l.s4 1966171168
    %v120 = vunpack.c.0.s8 %v119
    %v121 = vlaneseq
    %v122 = vshrl.u32 %v121, 7
    %v123 = vsub.s32 %v120, %v122
    %v124 = vrot.slane %v110, %v123
    %v125 = vcombine.high %v117, %v117
    %v126 = vcombine.high %v124, %v124
    %vm127 = vsmask.f32 256
    %vm128 = vsmask.f32 1284
    %vm129 = vmor %vm127, %vm128
    %vm130 = vsmask.f32 2312
    %vm131 = vmor %vm129, %vm130
    %vm132 = vsmask.f32 3340
    %vm133 = vmor %vm131, %vm132
    %vm134 = vsmask.f32 4368
    %vm135 = vmor %vm133, %vm134
    %vm136 = vsmask.f32 5396
    %vm137 = vmor %vm135, %vm136
    %vm138 = vsmask.f32 6424
    %vm139 = vmor %vm137, %vm138
    %vm140 = vsmask.f32 7452
    %vm141 = vmor %vm139, %vm140
    %v143 = vshrl.u32 %v93, 16
    %v145 = vrot.slane %v143, 7
    %v146 = vrot.slane %v145, 1
    %v148 = vshll.u32 %v100, 16
    %v150 = vsel %vm141, %v146, %v148
    %v151 = vshrl.u32 %v100, 16
    %v153 = vrot.slane %v151, 7
    %v154 = vrot.slane %v153, 1
    %v156 = vshll.u32 %v101, 16
    %v158 = vsel %vm141, %v154, %v156
    %v159 = vshrl.u32 %v101, 16
    %v161 = vrot.slane %v159, 7
    %v162 = vrot.slane %v161, 1
    %v164 = vshll.u32 %v102, 16
    %v166 = vsel %vm141, %v162, %v164
    %v168 = vshrl.u32 %v117, 16
    %v170 = vrot.slane %v168, 7
    %v171 = vrot.slane %v170, 1
    %v173 = vshll.u32 %v124, 16
    %v175 = vsel %vm141, %v171, %v173
    %v176 = vshrl.u32 %v124, 16
    %v178 = vrot.slane %v176, 7
    %v179 = vrot.slane %v178, 1
    %v181 = vshll.u32 %v125, 16
    %v183 = vsel %vm141, %v179, %v181
    %v184 = vshrl.u32 %v125, 16
    %v186 = vrot.slane %v184, 7
    %v187 = vrot.slane %v186, 1
    %v189 = vshll.u32 %v126, 16
    %v191 = vsel %vm141, %v187, %v189
    %v192 = vcombine.low %v150, %v158
    %v193 = vcombine.low %v166, %v175
    %v194 = vcombine.low %v183, %v191
    %v196 = vunpack.c.l.s4 1966171168
    %v197 = vunpack.c.0.s8 %v196
    %v198 = vlaneseq
    %v199 = vshrl.u32 %v198, 7
    %v200 = vsub.s32 %v197, %v199
    %v201 = vrot.slane %v192, %v200
    %v203 = vunpack.c.l.s4 1966171168
    %v204 = vunpack.c.0.s8 %v203
    %v205 = vlaneseq
    %v206 = vshrl.u32 %v205, 7
    %v207 = vsub.s32 %v204, %v206
    %v208 = vrot.slane %v193, %v207
    %v210 = vunpack.c.l.s4 1966171168
    %v211 = vunpack.c.0.s8 %v210
    %v212 = vlaneseq
    %v213 = vshrl.u32 %v212, 7
    %v214 = vsub.s32 %v211, %v213
    %v215 = vrot.slane %v194, %v214
    %v216 = vcombine.low %v201, %v208
    %v218 = vunpack.c.l.s4 1966171168
    %v219 = vunpack.c.0.s8 %v218
    %v220 = vlaneseq
    %v221 = vshrl.u32 %v220, 7
    %v222 = vsub.s32 %v219, %v221
    %v223 = vrot.slane %v216, %v222
    %v225 = vunpack.c.l.s4 1966171168
    %v226 = vunpack.c.0.s8 %v225
    %v227 = vlaneseq
    %v228 = vshrl.u32 %v227, 7
    %v229 = vsub.s32 %v226, %v228
    %v230 = vrot.slane %v215, %v229
    %v231 = vcombine.low %v223, %v230
    %v236 = vunpack.c.l.b16 %v61
    %v237 = vunpack.c.l.b16 %v62
    %v238 = vunpack.c.l.b16 %v63
    %v239 = vunpack.c.l.b16 %v64
    %v240 = vpack.c.b16 %v237, %v236
    %v241 = vpack.c.b16 %v239, %v238
    %vm244 = vcmask 261120
    %v246 = vsel %vm244, %v231, 0
    %248 = vmatprep.subr.bf16.mxu0 0
    %249 = vmatpush1.bf16.msra.mxu0 %v240
    %250 = vmatprep.subr.bf16.mxu0 0
    %251 = vmatpush1.bf16.msra.mxu0 %v241
    %252 = vmatprep.subr.bf16.mxu0 0
    %253 = vmatpush1.bf16.msra.mxu0 0
    %254 = vmatprep.subr.bf16.mxu0 0
    %255 = vmatpush1.bf16.msra.mxu0 0
    %256 = vmatprep.subr.bf16.mxu0 0
    %257 = vmatpush1.bf16.msra.mxu0 0
    %258 = vmatprep.subr.bf16.mxu0 0
    %259 = vmatpush1.bf16.msra.mxu0 0
    %260 = vmatprep.subr.bf16.mxu0 0
    %261 = vmatpush1.bf16.msra.mxu0 0
    %262 = vmatprep.subr.bf16.mxu0 0
    %263 = vmatpush1.bf16.msra.mxu0 0
    %264 = vmatprep.subr.bf16.mxu0 0
    %265 = vmatpush1.bf16.msra.mxu0 0
    %266 = vmatprep.subr.bf16.mxu0 0
    %267 = vmatpush1.bf16.msra.mxu0 0
    %268 = vmatprep.subr.bf16.mxu0 0
    %269 = vmatpush1.bf16.msra.mxu0 0
    %270 = vmatprep.subr.bf16.mxu0 0
    %271 = vmatpush1.bf16.msra.mxu0 0
    %272 = vmatprep.subr.bf16.mxu0 0
    %273 = vmatpush1.bf16.msra.mxu0 0
    %274 = vmatprep.subr.bf16.mxu0 0
    %275 = vmatpush1.bf16.msra.mxu0 0
    %276 = vmatprep.subr.bf16.mxu0 0
    %277 = vmatpush1.bf16.msra.mxu0 0
    %278 = vmatprep.subr.bf16.mxu0 0
    %279 = vmatpush1.bf16.msra.mxu0 0
    %280 = vmatprep.mubr.bf16.mxu0 0
    %281 = vmatmul.mubr.bf16.gmra.mrb[0].mxu0 %v246
    %v282 = vpop.f32.mrb[0].mxu0
    %v283 = vadd.f32 0.0, %v282
    %v284 = vpop.f32.mrb[0].mxu0
    %v285 = vpop.f32.mrb[0].mxu0
    %v286 = vadd.f32 0.0, %v285
    %v287 = vpop.f32.mrb[0].mxu0
    %288 = vdwg.mxu0
    %v289 = vcombine.low %v93, %v100
    %v290 = vcombine.low %v101, %v117
    %v291 = vcombine.low %v124, %v125
    %v293 = vunpack.c.l.s4 1966171168
    %v294 = vunpack.c.0.s8 %v293
    %v295 = vlaneseq
    %v296 = vshrl.u32 %v295, 7
    %v297 = vsub.s32 %v294, %v296
    %v298 = vrot.slane %v289, %v297
    %v300 = vunpack.c.l.s4 1966171168
    %v301 = vunpack.c.0.s8 %v300
    %v302 = vlaneseq
    %v303 = vshrl.u32 %v302, 7
    %v304 = vsub.s32 %v301, %v303
    %v305 = vrot.slane %v290, %v304
    %v307 = vunpack.c.l.s4 1966171168
    %v308 = vunpack.c.0.s8 %v307
    %v309 = vlaneseq
    %v310 = vshrl.u32 %v309, 7
    %v311 = vsub.s32 %v308, %v310
    %v312 = vrot.slane %v291, %v311
    %v313 = vcombine.low %v298, %v305
    %v315 = vunpack.c.l.s4 1966171168
    %v316 = vunpack.c.0.s8 %v315
    %v317 = vlaneseq
    %v318 = vshrl.u32 %v317, 7
    %v319 = vsub.s32 %v316, %v318
    %v320 = vrot.slane %v313, %v319
    %v322 = vunpack.c.l.s4 1966171168
    %v323 = vunpack.c.0.s8 %v322
    %v324 = vlaneseq
    %v325 = vshrl.u32 %v324, 7
    %v326 = vsub.s32 %v323, %v325
    %v327 = vrot.slane %v312, %v326
    %v328 = vcombine.low %v320, %v327
    %v333 = vunpack.c.l.b16 %v57
    %v334 = vunpack.c.l.b16 %v58
    %v335 = vunpack.c.l.b16 %v59
    %v336 = vunpack.c.l.b16 %v60
    %v337 = vpack.c.b16 %v334, %v333
    %v338 = vpack.c.b16 %v336, %v335
    %v342 = vsel %vm244, %v328, 0
    %344 = vmatprep.subr.bf16.mxu0 0
    %345 = vmatpush1.bf16.msra.mxu0 %v337
    %346 = vmatprep.subr.bf16.mxu0 0
    %347 = vmatpush1.bf16.msra.mxu0 %v338
    %348 = vmatprep.subr.bf16.mxu0 0
    %349 = vmatpush1.bf16.msra.mxu0 0
    %350 = vmatprep.subr.bf16.mxu0 0
    %351 = vmatpush1.bf16.msra.mxu0 0
    %352 = vmatprep.subr.bf16.mxu0 0
    %353 = vmatpush1.bf16.msra.mxu0 0
    %354 = vmatprep.subr.bf16.mxu0 0
    %355 = vmatpush1.bf16.msra.mxu0 0
    %356 = vmatprep.subr.bf16.mxu0 0
    %357 = vmatpush1.bf16.msra.mxu0 0
    %358 = vmatprep.subr.bf16.mxu0 0
    %359 = vmatpush1.bf16.msra.mxu0 0
    %360 = vmatprep.subr.bf16.mxu0 0
    %361 = vmatpush1.bf16.msra.mxu0 0
    %362 = vmatprep.subr.bf16.mxu0 0
    %363 = vmatpush1.bf16.msra.mxu0 0
    %364 = vmatprep.subr.bf16.mxu0 0
    %365 = vmatpush1.bf16.msra.mxu0 0
    %366 = vmatprep.subr.bf16.mxu0 0
    %367 = vmatpush1.bf16.msra.mxu0 0
    %368 = vmatprep.subr.bf16.mxu0 0
    %369 = vmatpush1.bf16.msra.mxu0 0
    %370 = vmatprep.subr.bf16.mxu0 0
    %371 = vmatpush1.bf16.msra.mxu0 0
    %372 = vmatprep.subr.bf16.mxu0 0
    %373 = vmatpush1.bf16.msra.mxu0 0
    %374 = vmatprep.subr.bf16.mxu0 0
    %375 = vmatpush1.bf16.msra.mxu0 0
    %376 = vmatprep.mubr.bf16.mxu0 0
    %377 = vmatmul.mubr.bf16.gmra.mrb[0].mxu0 %v342
    %v378 = vpop.f32.mrb[0].mxu0
    %v379 = vadd.f32 %v283, %v378
    %v380 = vpop.f32.mrb[0].mxu0
    %v381 = vpop.f32.mrb[0].mxu0
    %v382 = vadd.f32 %v286, %v381
    %v383 = vpop.f32.mrb[0].mxu0
    %384 = vdwg.mxu0
    %v387 = vcombine.high %v379, %v379
    %v389 = vunpack.c.l.s4 1983009808
    %v390 = vunpack.c.0.s8 %v389
    %v391 = vlaneseq
    %v392 = vshrl.u32 %v391, 7
    %v393 = vsub.s32 %v390, %v392
    %v394 = vrot.slane %v379, %v393
    %v396 = vunpack.c.l.s4 1983009808
    %v397 = vunpack.c.0.s8 %v396
    %v398 = vlaneseq
    %v399 = vshrl.u32 %v398, 7
    %v400 = vsub.s32 %v397, %v399
    %v401 = vrot.slane %v387, %v400
    %v402 = vcombine.high %v394, %v394
    %v403 = vcombine.high %v401, %v401
    %v405 = vunpack.c.l.s4 1983009808
    %v406 = vunpack.c.0.s8 %v405
    %v407 = vlaneseq
    %v408 = vshrl.u32 %v407, 7
    %v409 = vsub.s32 %v406, %v408
    %v410 = vrot.slane %v382, %v409
    %v411 = vcombine.high %v410, %v410
    %v418 = vcombine.low %v100, %v101
    %v419 = vcombine.low %v102, %v124
    %v420 = vcombine.low %v125, %v126
    %v422 = vunpack.c.l.s4 1966171168
    %v423 = vunpack.c.0.s8 %v422
    %v424 = vlaneseq
    %v425 = vshrl.u32 %v424, 7
    %v426 = vsub.s32 %v423, %v425
    %v427 = vrot.slane %v418, %v426
    %v429 = vunpack.c.l.s4 1966171168
    %v430 = vunpack.c.0.s8 %v429
    %v431 = vlaneseq
    %v432 = vshrl.u32 %v431, 7
    %v433 = vsub.s32 %v430, %v432
    %v434 = vrot.slane %v419, %v433
    %v436 = vunpack.c.l.s4 1966171168
    %v437 = vunpack.c.0.s8 %v436
    %v438 = vlaneseq
    %v439 = vshrl.u32 %v438, 7
    %v440 = vsub.s32 %v437, %v439
    %v441 = vrot.slane %v420, %v440
    %v442 = vcombine.low %v427, %v434
    %v444 = vunpack.c.l.s4 1966171168
    %v445 = vunpack.c.0.s8 %v444
    %v446 = vlaneseq
    %v447 = vshrl.u32 %v446, 7
    %v448 = vsub.s32 %v445, %v447
    %v449 = vrot.slane %v442, %v448
    %v451 = vunpack.c.l.s4 1966171168
    %v452 = vunpack.c.0.s8 %v451
    %v453 = vlaneseq
    %v454 = vshrl.u32 %v453, 7
    %v455 = vsub.s32 %v452, %v454
    %v456 = vrot.slane %v441, %v455
    %v457 = vcombine.low %v449, %v456
    %v462 = vunpack.c.l.b16 %v65
    %v463 = vunpack.c.l.b16 %v66
    %v464 = vunpack.c.l.b16 %v67
    %v465 = vunpack.c.l.b16 %v68
    %v466 = vpack.c.b16 %v463, %v462
    %v467 = vpack.c.b16 %v465, %v464
    %v471 = vsel %vm244, %v457, 0
    %473 = vmatprep.subr.bf16.mxu0 0
    %474 = vmatpush1.bf16.msra.mxu0 %v466
    %475 = vmatprep.subr.bf16.mxu0 0
    %476 = vmatpush1.bf16.msra.mxu0 %v467
    %477 = vmatprep.subr.bf16.mxu0 0
    %478 = vmatpush1.bf16.msra.mxu0 0
    %479 = vmatprep.subr.bf16.mxu0 0
    %480 = vmatpush1.bf16.msra.mxu0 0
    %481 = vmatprep.subr.bf16.mxu0 0
    %482 = vmatpush1.bf16.msra.mxu0 0
    %483 = vmatprep.subr.bf16.mxu0 0
    %484 = vmatpush1.bf16.msra.mxu0 0
    %485 = vmatprep.subr.bf16.mxu0 0
    %486 = vmatpush1.bf16.msra.mxu0 0
    %487 = vmatprep.subr.bf16.mxu0 0
    %488 = vmatpush1.bf16.msra.mxu0 0
    %489 = vmatprep.subr.bf16.mxu0 0
    %490 = vmatpush1.bf16.msra.mxu0 0
    %491 = vmatprep.subr.bf16.mxu0 0
    %492 = vmatpush1.bf16.msra.mxu0 0
    %493 = vmatprep.subr.bf16.mxu0 0
    %494 = vmatpush1.bf16.msra.mxu0 0
    %495 = vmatprep.subr.bf16.mxu0 0
    %496 = vmatpush1.bf16.msra.mxu0 0
    %497 = vmatprep.subr.bf16.mxu0 0
    %498 = vmatpush1.bf16.msra.mxu0 0
    %499 = vmatprep.subr.bf16.mxu0 0
    %500 = vmatpush1.bf16.msra.mxu0 0
    %501 = vmatprep.subr.bf16.mxu0 0
    %502 = vmatpush1.bf16.msra.mxu0 0
    %503 = vmatprep.subr.bf16.mxu0 0
    %504 = vmatpush1.bf16.msra.mxu0 0
    %505 = vmatprep.mubr.bf16.mxu0 0
    %506 = vmatmul.mubr.bf16.gmra.mrb[0].mxu0 %v471
    %v507 = vpop.f32.mrb[0].mxu0
    %v508 = vadd.f32 0.0, %v507
    %v509 = vpop.f32.mrb[0].mxu0
    %v510 = vpop.f32.mrb[0].mxu0
    %v511 = vadd.f32 0.0, %v510
    %v512 = vpop.f32.mrb[0].mxu0
    %513 = vdwg.mxu0
    %v516 = vcombine.high %v508, %v508
    %v518 = vunpack.c.l.s4 1983009808
    %v519 = vunpack.c.0.s8 %v518
    %v520 = vlaneseq
    %v521 = vshrl.u32 %v520, 7
    %v522 = vsub.s32 %v519, %v521
    %v523 = vrot.slane %v508, %v522
    %v525 = vunpack.c.l.s4 1983009808
    %v526 = vunpack.c.0.s8 %v525
    %v527 = vlaneseq
    %v528 = vshrl.u32 %v527, 7
    %v529 = vsub.s32 %v526, %v528
    %v530 = vrot.slane %v516, %v529
    %v531 = vcombine.high %v523, %v523
    %v532 = vcombine.high %v530, %v530
    %v534 = vunpack.c.l.s4 1983009808
    %v535 = vunpack.c.0.s8 %v534
    %v536 = vlaneseq
    %v537 = vshrl.u32 %v536, 7
    %v538 = vsub.s32 %v535, %v537
    %v539 = vrot.slane %v511, %v538
    %v540 = vcombine.high %v539, %v539
    %v547 = vadd.f32 %v394, %v523
    %v548 = vadd.f32 %v402, %v531
    %v549 = vadd.f32 %v401, %v530
    %v550 = vadd.f32 %v403, %v532
    %v551 = vadd.f32 %v410, %v539
    %v552 = vadd.f32 %v411, %v540
    %v556 = vunpack.c.l.s4 1966171168
    %v557 = vunpack.c.0.s8 %v556
    %v558 = vlaneseq
    %v559 = vshrl.u32 %v558, 7
    %v560 = vsub.s32 %v557, %v559
    %v561 = vrot.slane %v54, %v560
    %v563 = vunpack.c.l.s4 1966171168
    %v564 = vunpack.c.0.s8 %v563
    %v565 = vlaneseq
    %v566 = vshrl.u32 %v565, 7
    %v567 = vsub.s32 %v564, %v566
    %v568 = vrot.slane %v561, %v567
    %v570 = vunpack.c.l.s4 1966171168
    %v571 = vunpack.c.0.s8 %v570
    %v572 = vlaneseq
    %v573 = vshrl.u32 %v572, 7
    %v574 = vsub.s32 %v571, %v573
    %v575 = vrot.slane %v56, %v574
    %v577 = vunpack.c.l.s4 1966171168
    %v578 = vunpack.c.0.s8 %v577
    %v579 = vlaneseq
    %v580 = vshrl.u32 %v579, 7
    %v581 = vsub.s32 %v578, %v580
    %v582 = vrot.slane %v575, %v581
    %v583 = vshrl.u32 %v102, 16
    %v585 = vrot.slane %v583, 7
    %v586 = vrot.slane %v585, 1
    %v588 = vshll.u32 %v568, 16
    %v590 = vsel %vm141, %v586, %v588
    %v591 = vshrl.u32 %v126, 16
    %v593 = vrot.slane %v591, 7
    %v594 = vrot.slane %v593, 1
    %v596 = vshll.u32 %v582, 16
    %v598 = vsel %vm141, %v594, %v596
    %v599 = vcombine.low %v158, %v166
    %v600 = vcombine.low %v590, %v183
    %v601 = vcombine.low %v191, %v598
    %v603 = vunpack.c.l.s4 1966171168
    %v604 = vunpack.c.0.s8 %v603
    %v605 = vlaneseq
    %v606 = vshrl.u32 %v605, 7
    %v607 = vsub.s32 %v604, %v606
    %v608 = vrot.slane %v599, %v607
    %v610 = vunpack.c.l.s4 1966171168
    %v611 = vunpack.c.0.s8 %v610
    %v612 = vlaneseq
    %v613 = vshrl.u32 %v612, 7
    %v614 = vsub.s32 %v611, %v613
    %v615 = vrot.slane %v600, %v614
    %v617 = vunpack.c.l.s4 1966171168
    %v618 = vunpack.c.0.s8 %v617
    %v619 = vlaneseq
    %v620 = vshrl.u32 %v619, 7
    %v621 = vsub.s32 %v618, %v620
    %v622 = vrot.slane %v601, %v621
    %v623 = vcombine.low %v608, %v615
    %v625 = vunpack.c.l.s4 1966171168
    %v626 = vunpack.c.0.s8 %v625
    %v627 = vlaneseq
    %v628 = vshrl.u32 %v627, 7
    %v629 = vsub.s32 %v626, %v628
    %v630 = vrot.slane %v623, %v629
    %v632 = vunpack.c.l.s4 1966171168
    %v633 = vunpack.c.0.s8 %v632
    %v634 = vlaneseq
    %v635 = vshrl.u32 %v634, 7
    %v636 = vsub.s32 %v633, %v635
    %v637 = vrot.slane %v622, %v636
    %v638 = vcombine.low %v630, %v637
    %v643 = vunpack.c.l.b16 %v69
    %v644 = vunpack.c.l.b16 %v70
    %v645 = vunpack.c.l.b16 %v71
    %v646 = vunpack.c.l.b16 %v72
    %v647 = vpack.c.b16 %v644, %v643
    %v648 = vpack.c.b16 %v646, %v645
    %v652 = vsel %vm244, %v638, 0
    %654 = vmatprep.subr.bf16.mxu0 0
    %655 = vmatpush1.bf16.msra.mxu0 %v647
    %656 = vmatprep.subr.bf16.mxu0 0
    %657 = vmatpush1.bf16.msra.mxu0 %v648
    %658 = vmatprep.subr.bf16.mxu0 0
    %659 = vmatpush1.bf16.msra.mxu0 0
    %660 = vmatprep.subr.bf16.mxu0 0
    %661 = vmatpush1.bf16.msra.mxu0 0
    %662 = vmatprep.subr.bf16.mxu0 0
    %663 = vmatpush1.bf16.msra.mxu0 0
    %664 = vmatprep.subr.bf16.mxu0 0
    %665 = vmatpush1.bf16.msra.mxu0 0
    %666 = vmatprep.subr.bf16.mxu0 0
    %667 = vmatpush1.bf16.msra.mxu0 0
    %668 = vmatprep.subr.bf16.mxu0 0
    %669 = vmatpush1.bf16.msra.mxu0 0
    %670 = vmatprep.subr.bf16.mxu0 0
    %671 = vmatpush1.bf16.msra.mxu0 0
    %672 = vmatprep.subr.bf16.mxu0 0
    %673 = vmatpush1.bf16.msra.mxu0 0
    %674 = vmatprep.subr.bf16.mxu0 0
    %675 = vmatpush1.bf16.msra.mxu0 0
    %676 = vmatprep.subr.bf16.mxu0 0
    %677 = vmatpush1.bf16.msra.mxu0 0
    %678 = vmatprep.subr.bf16.mxu0 0
    %679 = vmatpush1.bf16.msra.mxu0 0
    %680 = vmatprep.subr.bf16.mxu0 0
    %681 = vmatpush1.bf16.msra.mxu0 0
    %682 = vmatprep.subr.bf16.mxu0 0
    %683 = vmatpush1.bf16.msra.mxu0 0
    %684 = vmatprep.subr.bf16.mxu0 0
    %685 = vmatpush1.bf16.msra.mxu0 0
    %686 = vmatprep.mubr.bf16.mxu0 0
    %687 = vmatmul.mubr.bf16.gmra.mrb[0].mxu0 %v652
    %v688 = vpop.f32.mrb[0].mxu0
    %v689 = vadd.f32 0.0, %v688
    %v690 = vpop.f32.mrb[0].mxu0
    %v691 = vpop.f32.mrb[0].mxu0
    %v692 = vadd.f32 0.0, %v691
    %v693 = vpop.f32.mrb[0].mxu0
    %694 = vdwg.mxu0
    %v697 = vcombine.high %v689, %v689
    %v699 = vunpack.c.l.s4 1983009808
    %v700 = vunpack.c.0.s8 %v699
    %v701 = vlaneseq
    %v702 = vshrl.u32 %v701, 7
    %v703 = vsub.s32 %v700, %v702
    %v704 = vrot.slane %v689, %v703
    %v706 = vunpack.c.l.s4 1983009808
    %v707 = vunpack.c.0.s8 %v706
    %v708 = vlaneseq
    %v709 = vshrl.u32 %v708, 7
    %v710 = vsub.s32 %v707, %v709
    %v711 = vrot.slane %v697, %v710
    %v712 = vcombine.high %v704, %v704
    %v713 = vcombine.high %v711, %v711
    %v715 = vunpack.c.l.s4 1983009808
    %v716 = vunpack.c.0.s8 %v715
    %v717 = vlaneseq
    %v718 = vshrl.u32 %v717, 7
    %v719 = vsub.s32 %v716, %v718
    %v720 = vrot.slane %v692, %v719
    %v721 = vcombine.high %v720, %v720
    %v728 = vadd.f32 %v547, %v704
    %v729 = vadd.f32 %v548, %v712
    %v730 = vadd.f32 %v549, %v711
    %v731 = vadd.f32 %v550, %v713
    %v732 = vadd.f32 %v551, %v720
    %v733 = vadd.f32 %v552, %v721
    %v734 = vcombine.low %v101, %v102
    %v735 = vcombine.low %v568, %v125
    %v736 = vcombine.low %v126, %v582
    %v738 = vunpack.c.l.s4 1966171168
    %v739 = vunpack.c.0.s8 %v738
    %v740 = vlaneseq
    %v741 = vshrl.u32 %v740, 7
    %v742 = vsub.s32 %v739, %v741
    %v743 = vrot.slane %v734, %v742
    %v745 = vunpack.c.l.s4 1966171168
    %v746 = vunpack.c.0.s8 %v745
    %v747 = vlaneseq
    %v748 = vshrl.u32 %v747, 7
    %v749 = vsub.s32 %v746, %v748
    %v750 = vrot.slane %v735, %v749
    %v752 = vunpack.c.l.s4 1966171168
    %v753 = vunpack.c.0.s8 %v752
    %v754 = vlaneseq
    %v755 = vshrl.u32 %v754, 7
    %v756 = vsub.s32 %v753, %v755
    %v757 = vrot.slane %v736, %v756
    %v758 = vcombine.low %v743, %v750
    %v760 = vunpack.c.l.s4 1966171168
    %v761 = vunpack.c.0.s8 %v760
    %v762 = vlaneseq
    %v763 = vshrl.u32 %v762, 7
    %v764 = vsub.s32 %v761, %v763
    %v765 = vrot.slane %v758, %v764
    %v767 = vunpack.c.l.s4 1966171168
    %v768 = vunpack.c.0.s8 %v767
    %v769 = vlaneseq
    %v770 = vshrl.u32 %v769, 7
    %v771 = vsub.s32 %v768, %v770
    %v772 = vrot.slane %v757, %v771
    %v773 = vcombine.low %v765, %v772
    %v778 = vunpack.c.l.b16 %v73
    %v779 = vunpack.c.l.b16 %v74
    %v780 = vunpack.c.l.b16 %v75
    %v781 = vunpack.c.l.b16 %v76
    %v782 = vpack.c.b16 %v779, %v778
    %v783 = vpack.c.b16 %v781, %v780
    %v787 = vsel %vm244, %v773, 0
    %789 = vmatprep.subr.bf16.mxu0 0
    %790 = vmatpush1.bf16.msra.mxu0 %v782
    %791 = vmatprep.subr.bf16.mxu0 0
    %792 = vmatpush1.bf16.msra.mxu0 %v783
    %793 = vmatprep.subr.bf16.mxu0 0
    %794 = vmatpush1.bf16.msra.mxu0 0
    %795 = vmatprep.subr.bf16.mxu0 0
    %796 = vmatpush1.bf16.msra.mxu0 0
    %797 = vmatprep.subr.bf16.mxu0 0
    %798 = vmatpush1.bf16.msra.mxu0 0
    %799 = vmatprep.subr.bf16.mxu0 0
    %800 = vmatpush1.bf16.msra.mxu0 0
    %801 = vmatprep.subr.bf16.mxu0 0
    %802 = vmatpush1.bf16.msra.mxu0 0
    %803 = vmatprep.subr.bf16.mxu0 0
    %804 = vmatpush1.bf16.msra.mxu0 0
    %805 = vmatprep.subr.bf16.mxu0 0
    %806 = vmatpush1.bf16.msra.mxu0 0
    %807 = vmatprep.subr.bf16.mxu0 0
    %808 = vmatpush1.bf16.msra.mxu0 0
    %809 = vmatprep.subr.bf16.mxu0 0
    %810 = vmatpush1.bf16.msra.mxu0 0
    %811 = vmatprep.subr.bf16.mxu0 0
    %812 = vmatpush1.bf16.msra.mxu0 0
    %813 = vmatprep.subr.bf16.mxu0 0
    %814 = vmatpush1.bf16.msra.mxu0 0
    %815 = vmatprep.subr.bf16.mxu0 0
    %816 = vmatpush1.bf16.msra.mxu0 0
    %817 = vmatprep.subr.bf16.mxu0 0
    %818 = vmatpush1.bf16.msra.mxu0 0
    %819 = vmatprep.subr.bf16.mxu0 0
    %820 = vmatpush1.bf16.msra.mxu0 0
    %821 = vmatprep.mubr.bf16.mxu0 0
    %822 = vmatmul.mubr.bf16.gmra.mrb[0].mxu0 %v787
    %v823 = vpop.f32.mrb[0].mxu0
    %v824 = vadd.f32 0.0, %v823
    %v825 = vpop.f32.mrb[0].mxu0
    %v826 = vpop.f32.mrb[0].mxu0
    %v827 = vadd.f32 0.0, %v826
    %v828 = vpop.f32.mrb[0].mxu0
    %829 = vdwg.mxu0
    %v832 = vcombine.high %v824, %v824
    %v834 = vunpack.c.l.s4 1983009808
    %v835 = vunpack.c.0.s8 %v834
    %v836 = vlaneseq
    %v837 = vshrl.u32 %v836, 7
    %v838 = vsub.s32 %v835, %v837
    %v839 = vrot.slane %v824, %v838
    %v841 = vunpack.c.l.s4 1983009808
    %v842 = vunpack.c.0.s8 %v841
    %v843 = vlaneseq
    %v844 = vshrl.u32 %v843, 7
    %v845 = vsub.s32 %v842, %v844
    %v846 = vrot.slane %v832, %v845
    %v847 = vcombine.high %v839, %v839
    %v848 = vcombine.high %v846, %v846
    %v850 = vunpack.c.l.s4 1983009808
    %v851 = vunpack.c.0.s8 %v850
    %v852 = vlaneseq
    %v853 = vshrl.u32 %v852, 7
    %v854 = vsub.s32 %v851, %v853
    %v855 = vrot.slane %v827, %v854
    %v856 = vcombine.high %v855, %v855
    %v863 = vadd.f32 %v728, %v839
    %v864 = vadd.f32 %v729, %v847
    %v865 = vadd.f32 %v730, %v846
    %v866 = vadd.f32 %v731, %v848
    %v867 = vadd.f32 %v732, %v855
    %v868 = vadd.f32 %v733, %v856
    %v869 = vld [vmem:[%s2] sm:$0x1]
    %v871 = vlaneseq
    %v872 = vshrl.u32 %v871, 7
    %v873 = vsub.s32 0, %v872
    %v874 = vrot.slane %v869, %v873
    %v875 = vcombine.high %v874, %v874
    %v877 = vunpack.c.l.s4 1983009808
    %v878 = vunpack.c.0.s8 %v877
    %v879 = vlaneseq
    %v880 = vshrl.u32 %v879, 7
    %v881 = vsub.s32 %v878, %v880
    %v882 = vrot.slane %v874, %v881
    %v884 = vunpack.c.l.s4 1983009808
    %v885 = vunpack.c.0.s8 %v884
    %v886 = vlaneseq
    %v887 = vshrl.u32 %v886, 7
    %v888 = vsub.s32 %v885, %v887
    %v889 = vrot.slane %v875, %v888
    %v890 = vcombine.high %v882, %v882
    %v894 = vadd.f32 %v863, %v882
    %v895 = vadd.f32 %v864, %v890
    %v896 = vadd.f32 %v865, %v889
    %v897 = vadd.f32 %v866, %v882
    %v898 = vadd.f32 %v867, %v890
    %v899 = vadd.f32 %v868, %v889
    %v900 = vld [vmem:[%s3] sm:$0x3f]
    %v902 = vcombine.high %v900, %v900
    %v904 = vunpack.c.l.s4 1983009808
    %v905 = vunpack.c.0.s8 %v904
    %v906 = vlaneseq
    %v907 = vshrl.u32 %v906, 7
    %v908 = vsub.s32 %v905, %v907
    %v909 = vrot.slane %v900, %v908
    %v911 = vunpack.c.l.s4 1983009808
    %v912 = vunpack.c.0.s8 %v911
    %v913 = vlaneseq
    %v914 = vshrl.u32 %v913, 7
    %v915 = vsub.s32 %v912, %v914
    %v916 = vrot.slane %v902, %v915
    %v917 = vcombine.high %v909, %v909
    %v921 = vmul.f32 %v894, %v909
    %v922 = vmul.f32 %v895, %v917
    %v923 = vmul.f32 %v896, %v916
    %v924 = vmul.f32 %v897, %v909
    %v925 = vmul.f32 %v898, %v917
    %v926 = vmul.f32 %v899, %v916
    %v933 = vcombine.low %v921, %v922
    %v935 = vunpack.c.l.s4 1983009808
    %v936 = vunpack.c.0.s8 %v935
    %v937 = vlaneseq
    %v938 = vshrl.u32 %v937, 7
    %v939 = vsub.s32 %v936, %v938
    %v940 = vrot.slane %v933, %v939
    %v942 = vunpack.c.l.s4 1983009808
    %v943 = vunpack.c.0.s8 %v942
    %v944 = vlaneseq
    %v945 = vshrl.u32 %v944, 7
    %v946 = vsub.s32 %v943, %v945
    %v947 = vrot.slane %v923, %v946
    %v948 = vcombine.low %v940, %v947
    %v949 = vcombine.low %v924, %v925
    %v951 = vunpack.c.l.s4 1983009808
    %v952 = vunpack.c.0.s8 %v951
    %v953 = vlaneseq
    %v954 = vshrl.u32 %v953, 7
    %v955 = vsub.s32 %v952, %v954
    %v956 = vrot.slane %v949, %v955
    %v958 = vunpack.c.l.s4 1983009808
    %v959 = vunpack.c.0.s8 %v958
    %v960 = vlaneseq
    %v961 = vshrl.u32 %v960, 7
    %v962 = vsub.s32 %v959, %v961
    %v963 = vrot.slane %v926, %v962
    %v964 = vcombine.low %v956, %v963
    %vm967 = vcmask 1045504
    %v968 = vsel %vm967, %v948, -inf
    %v969 = vrot.slane %v968, 4
    %v970 = vmax.f32 %v968, %v969
    %v971 = vrot.slane %v970, 2
    %v972 = vmax.f32 %v970, %v971
    %v973 = vrot.slane %v972, 1
    %v974 = vmax.f32 %v972, %v973
    %v975 = vsel %vm967, %v964, -inf
    %v976 = vrot.slane %v975, 4
    %v977 = vmax.f32 %v975, %v976
    %v978 = vrot.slane %v977, 2
    %v979 = vmax.f32 %v977, %v978
    %v980 = vrot.slane %v979, 1
    %v981 = vmax.f32 %v979, %v980
    %v982 = vmax.f32 %v974, 0.0
    %v983 = vmax.f32 %v981, 0.0
    %v984 = vpack.c.bf16 %v982, %v982
    %v985 = vpack.c.bf16 %v983, %v983
    %v986 = vld [vmem:[#allocation5] sm:$0xf]
    %v987 = vld [vmem:[#allocation5 + $0x4] sm:$0xf]
    %v988 = vld [vmem:[#allocation5 + $0x8] sm:$0xf]
    %v989 = vld [vmem:[#allocation5 + $0xc] sm:$0xf]
    %v990 = vld [vmem:[#allocation5 + $0x10] sm:$0xf]
    %v991 = vld [vmem:[#allocation5 + $0x14] sm:$0xf]
    %v992 = vld [vmem:[#allocation5 + $0x18] sm:$0xf]
    %v993 = vld [vmem:[#allocation5 + $0x1c] sm:$0xf]
    %v994 = vld [vmem:[#allocation5 + $0x20] sm:$0xf]
    %v995 = vld [vmem:[#allocation5 + $0x24] sm:$0xf]
    %v996 = vld [vmem:[#allocation5 + $0x28] sm:$0xf]
    %v997 = vld [vmem:[#allocation5 + $0x2c] sm:$0xf]
    %v998 = vld [vmem:[#allocation5 + $0x30] sm:$0xf]
    %v999 = vld [vmem:[#allocation5 + $0x34] sm:$0xf]
    %v1000 = vld [vmem:[#allocation5 + $0x38] sm:$0xf]
    %v1001 = vld [vmem:[#allocation5 + $0x3c] sm:$0xf]
    %v1002 = vld [vmem:[%s5] sm:$0x1]
    %v1004 = vlaneseq
    %v1005 = vshrl.u32 %v1004, 7
    %v1006 = vsub.s32 0, %v1005
    %v1007 = vrot.slane %v1002, %v1006
    %v1011 = vunpack.c.l.b16 %v984
    %v1012 = vunpack.c.l.b16 %v985
    %vm1013 = vcmask 1041409
    %v1014 = vsel %vm1013, %v1012, %v1011
    %v1015 = vpack.c.b16 %v1014, %v1014
    %v1033 = vunpack.c.l.b16 %v986
    %v1034 = vunpack.c.l.b16 %v987
    %v1035 = vunpack.c.l.b16 %v988
    %v1036 = vunpack.c.l.b16 %v989
    %v1037 = vunpack.c.l.b16 %v990
    %v1038 = vunpack.c.l.b16 %v991
    %v1039 = vunpack.c.l.b16 %v992
    %v1040 = vunpack.c.l.b16 %v993
    %v1041 = vunpack.c.l.b16 %v994
    %v1042 = vunpack.c.l.b16 %v995
    %v1043 = vunpack.c.l.b16 %v996
    %v1044 = vunpack.c.l.b16 %v997
    %v1045 = vunpack.c.l.b16 %v998
    %v1046 = vunpack.c.l.b16 %v999
    %v1047 = vunpack.c.l.b16 %v1000
    %v1048 = vunpack.c.l.b16 %v1001
    %v1049 = vpack.c.b16 %v1034, %v1033
    %v1050 = vpack.c.b16 %v1036, %v1035
    %v1051 = vpack.c.b16 %v1038, %v1037
    %v1052 = vpack.c.b16 %v1040, %v1039
    %v1053 = vpack.c.b16 %v1042, %v1041
    %v1054 = vpack.c.b16 %v1044, %v1043
    %v1055 = vpack.c.b16 %v1046, %v1045
    %v1056 = vpack.c.b16 %v1048, %v1047
    %1065 = vmatprep.subr.bf16.mxu0 0
    %1066 = vmatpush1.bf16.msra.mxu0 %v1049
    %1067 = vmatprep.subr.bf16.mxu0 0
    %1068 = vmatpush1.bf16.msra.mxu0 %v1050
    %1069 = vmatprep.subr.bf16.mxu0 0
    %1070 = vmatpush1.bf16.msra.mxu0 %v1051
    %1071 = vmatprep.subr.bf16.mxu0 0
    %1072 = vmatpush1.bf16.msra.mxu0 %v1052
    %1073 = vmatprep.subr.bf16.mxu0 0
    %1074 = vmatpush1.bf16.msra.mxu0 %v1053
    %1075 = vmatprep.subr.bf16.mxu0 0
    %1076 = vmatpush1.bf16.msra.mxu0 %v1054
    %1077 = vmatprep.subr.bf16.mxu0 0
    %1078 = vmatpush1.bf16.msra.mxu0 %v1055
    %1079 = vmatprep.subr.bf16.mxu0 0
    %1080 = vmatpush1.bf16.msra.mxu0 %v1056
    %1081 = vmatprep.subr.bf16.mxu0 0
    %1082 = vmatpush1.bf16.msra.mxu0 0
    %1083 = vmatprep.subr.bf16.mxu0 0
    %1084 = vmatpush1.bf16.msra.mxu0 0
    %1085 = vmatprep.subr.bf16.mxu0 0
    %1086 = vmatpush1.bf16.msra.mxu0 0
    %1087 = vmatprep.subr.bf16.mxu0 0
    %1088 = vmatpush1.bf16.msra.mxu0 0
    %1089 = vmatprep.subr.bf16.mxu0 0
    %1090 = vmatpush1.bf16.msra.mxu0 0
    %1091 = vmatprep.subr.bf16.mxu0 0
    %1092 = vmatpush1.bf16.msra.mxu0 0
    %1093 = vmatprep.subr.bf16.mxu0 0
    %1094 = vmatpush1.bf16.msra.mxu0 0
    %1095 = vmatprep.subr.bf16.mxu0 0
    %1096 = vmatpush1.bf16.msra.mxu0 0
    %1097 = vmatprep.mubr.bf16.mxu0 0
    %1098 = vmatmul.mubr.bf16.gmra.mrb[0].mxu0 %v1015
    %v1099 = vpop.f32.mrb[0].mxu0
    %v1100 = vadd.f32 %v1007, %v1099
    %v1101 = vpop.f32.mrb[0].mxu0
    %v1102 = vpop.f32.mrb[0].mxu0
    %v1103 = vpop.f32.mrb[0].mxu0
    %1104 = vdwg.mxu0
    %1105 = vst [vmem:[#allocation7] sm:$0x3] %v1100
    // Predicated region
    $region34: #{tpu_custom_call.1} parent=1 // pred_check
      _
    $region35: #{tpu_custom_call.1} parent=1 // pred_check_branch
      %1107 = sbr.rel (0) target = $region37
    $region36: #{tpu_custom_call.1} parent=1 // pred_region
      %s1109 = ssub.s32 32, 32
      %1110 = vsyncadd [#allocation4], %s1109
      %s1112 = sshll.u32 [#allocation7], 4
      %s1113 = int_to_ptr.vmem [resolvable:$true] %s1112
      %1115 = dma.vmem_to_hbm [thread:$0]  %s1113, 32, %s6, [#allocation4]
    $region37: #{tpu_custom_call.1} parent=1 // pred_fallthru
      _
    // Predicated region
    $region38: #{tpu_custom_call.1} parent=1 // pred_check
      _
    $region39: #{tpu_custom_call.1} parent=1 // pred_check_branch
      %1117 = sbr.rel (0) target = $region41
    $region40: #{tpu_custom_call.1} parent=1 // pred_region
      %1118 = dma.done [#allocation4], 32
    $region41: #{tpu_custom_call.1} parent=1 // pred_fallthru
      _
    %1119 = vsyncpa [#allocation3], 1
    %1120 = vsyncpa [#allocation6], 1
    %1121 = vsyncpa [#allocation4], 1

</llo_original>
